<compile_context>
chip_gen: v5e
topology: v5e:2x2
jax: 0.10.0
libtpu: 0.0.40
codegen_flags: <defaults>
</compile_context>

<pallas_src>
import jax
import jax.numpy as jnp
from jax.experimental import pallas as pl
from jax.experimental.pallas import tpu as pltpu

EPS = 1e-5
DIMS = [7, 512, 128, 64, 32, 16, 8, 4]   # layer widths (linear i: DIMS[i] -> DIMS[i+1])
N_LIN = len(DIMS) - 1                    # 7 linear layers
N_BN = 4                                 # bn1, bn10, bn11, bn2 (the ones used in forward)
LANE = 128
IN_PAD = 8                               # fc1 input dim padded 7 -> 8 (sublane aligned)


def _round_up(d, m=LANE):
    return ((d + m - 1) // m) * m


# Packed-vector layout: [bias_0..bias_6 | gamma_0..gamma_3 | beta_0..beta_3],
# each segment starting at (and padded to) a 128-lane boundary.
_VEC_SEGS = []                           # (offset, real_width, padded_width)
_off = 0
for _d in DIMS[1:]:                      # 7 biases
    _VEC_SEGS.append((_off, _d, _round_up(_d))); _off += _round_up(_d)
for _d in DIMS[1:1 + N_BN]:              # 4 gammas
    _VEC_SEGS.append((_off, _d, _round_up(_d))); _off += _round_up(_d)
for _d in DIMS[1:1 + N_BN]:              # 4 betas
    _VEC_SEGS.append((_off, _d, _round_up(_d))); _off += _round_up(_d)
VEC_TOTAL = _off                         # 3072

# Weight slab: fc10, fc11, fc2, fc3, fc4, fc5 stacked along rows, columns zero-padded
# to 128 lanes.  Row offsets 0, 512, 640, 704, 736, 752 are all 8-multiples.
SLAB_LAYERS = list(range(1, N_LIN))
SLAB_ROW_OFF = {}
_r = 0
for _i in SLAB_LAYERS:
    SLAB_ROW_OFF[_i] = _r
    _r += DIMS[_i]
SLAB_ROWS = _r                           # 760


def decoder_kernel(x_ref, w1_ref, wslab_ref, vec_ref, out_ref):
    """Whole forward pass in one kernel; all tensors resident in VMEM."""
    mm_dtype = w1_ref.dtype              # f32, or bf16 for the MXU fast path
    batch = x_ref.shape[0]
    inv_b = 1.0 / batch
    # (1,B) ones row: batch-moment reductions become (1,B)@(B,D) MXU matmuls instead
    # of sublane-direction VPU/XLU reductions.
    ones_bt = jnp.ones((1, batch), jnp.float32)

    def seg(k):
        off, _, dp = _VEC_SEGS[k]
        return vec_ref[:, off:off + dp]          # (1, dp) lane-aligned load at use site

    bias = lambda i: seg(i)                      # i in [0, N_LIN)
    gamma = lambda i: seg(N_LIN + i)             # i in [0, N_BN)
    beta = lambda i: seg(N_LIN + N_BN + i)

    def slab_w(i):                               # linear index 1..6, full 128-lane width
        r = SLAB_ROW_OFF[i]
        return wslab_ref[r:r + DIMS[i], :]

    def linear(h, w, i):
        d_in = w.shape[0]
        acc = jnp.dot(h[:, :d_in].astype(mm_dtype), w,
                      preferred_element_type=jnp.float32)
        return acc + bias(i)                     # bias add in f32, full padded width

    relu = lambda a: jnp.maximum(a, 0.0)

    def batchnorm(h, i):
        # PyTorch train-mode BN (batch mean, biased batch variance), moments on the
        # MXU, normalize fused into one scale/shift.  Variance via E[x^2]-E[x]^2
        # (one fewer full-width pass; max(.,0) guards tiny negative cancellation).
        sum_h = jnp.dot(ones_bt, h, preferred_element_type=jnp.float32)
        sum_h2 = jnp.dot(ones_bt, h * h, preferred_element_type=jnp.float32)
        mean = sum_h * inv_b
        var = jnp.maximum(sum_h2 * inv_b - mean * mean, 0.0)
        scale = gamma(i) * jax.lax.rsqrt(var + EPS)          # (1, dp) row math
        shift = beta(i) - mean * scale
        return h * scale + shift                             # 2 full-width passes

    h = x_ref[...].astype(jnp.float32)                       # (B, 8), column 7 is zero
    h = batchnorm(relu(linear(h, w1_ref[...], 0)), 0)        # fc1  + bn1   (B, 512)
    h = batchnorm(relu(linear(h, slab_w(1), 1)), 1)          # fc10 + bn10  (B, 128)
    h = batchnorm(relu(linear(h, slab_w(2), 2)), 2)          # fc11 + bn11  (B, 128; cols>=64 zero)
    h = batchnorm(relu(linear(h, slab_w(3), 3)), 3)          # fc2  + bn2   (B, 128; cols>=32 zero)
    h = relu(linear(h, slab_w(4), 4))                        # fc3          (B, 128; cols>=16 zero)
    h = relu(linear(h, slab_w(5), 5))                        # fc4          (B, 128; cols>=8  zero)
    h = linear(h, slab_w(6), 6)                              # fc5          (B, 128; cols>=4  zero)
    out_ref[...] = jnp.tanh(h[:, :DIMS[-1]]).astype(out_ref.dtype)


def init_params(key):
    """Deterministic PyTorch-style init: U(+-1/sqrt(fan_in)) for W and b."""
    lin = []
    for i in range(N_LIN):
        d_in, d_out = DIMS[i], DIMS[i + 1]
        key, kw, kb = jax.random.split(key, 3)
        bound = 1.0 / float(d_in) ** 0.5
        w = jax.random.uniform(kw, (d_in, d_out), jnp.float32, -bound, bound)
        b = jax.random.uniform(kb, (d_out,), jnp.float32, -bound, bound)
        lin.append((w, b))
    bn = [(jnp.ones((d,), jnp.float32), jnp.zeros((d,), jnp.float32))
          for d in DIMS[1:1 + N_BN]]
    return lin, bn


def pack_params(lin, bn, weights_dtype=jnp.float32):
    """Pack 24 tensors into 3 DMA-friendly buffers.

    weights_dtype=jnp.bfloat16 is recommended on all TPU generations (the MXU
    natively consumes bf16; every elementwise op stays f32) - it halves the weight
    DMA bytes of a DMA/latency-bound kernel.

    ZERO-PADDING INVARIANT (relied upon by the kernel's full-lane-width math):
    every padded weight column, bias lane, gamma lane and beta lane must be exactly
    zero so padded activation columns remain exactly zero through linear/relu/BN.
    """
    # fc1 weight, input dim zero-padded 7 -> 8 (sublane aligned contraction).
    w1 = jnp.zeros((IN_PAD, DIMS[1]), weights_dtype)
    w1 = w1.at[:DIMS[0], :].set(lin[0][0].astype(weights_dtype))

    # One (760, 128) slab holding fc10..fc5 stacked along rows.
    wslab = jnp.zeros((SLAB_ROWS, LANE), weights_dtype)
    for i in SLAB_LAYERS:
        r = SLAB_ROW_OFF[i]
        wslab = wslab.at[r:r + DIMS[i], :DIMS[i + 1]].set(
            lin[i][0].astype(weights_dtype))

    # One (1, 3072) slab for biases / gammas / betas (kept f32 for f32 elementwise math).
    vec = jnp.zeros((1, VEC_TOTAL), jnp.float32)
    vals = ([lin[i][1] for i in range(N_LIN)]
            + [g for g, _ in bn] + [b for _, b in bn])
    for k, v in enumerate(vals):
        off, d, _ = _VEC_SEGS[k]
        vec = vec.at[0, off:off + d].set(v)

    return w1, wslab, vec


def decoder_forward(x, packed_params):
    w1, wslab, vec = packed_params
    batch = x.shape[0]
    if x.shape[1] < IN_PAD:                      # pad feature dim 7 -> 8 with zeros
        x = jnp.pad(x, ((0, 0), (0, IN_PAD - x.shape[1])))

    # Scoped-VMEM limit sized to weights + activations, capped at 64 MiB so the same
    # call compiles on v7x (64 MiB physical VMEM per TensorCore).
    wbytes = jnp.dtype(w1.dtype).itemsize
    est = (2 * (w1.size * wbytes + wslab.size * wbytes + vec.size * 4)
           + batch * 24 * 1024 + (2 << 20))
    vmem_limit = int(min(64 << 20, max(32 << 20, est)))

    vmem = pl.BlockSpec(memory_space=pltpu.MemorySpace.VMEM)
    return pl.pallas_call(
        decoder_kernel,
        out_shape=jax.ShapeDtypeStruct((batch, DIMS[-1]), jnp.float32),
        in_specs=[vmem] * 4,
        out_specs=vmem,
        compiler_params=pltpu.CompilerParams(vmem_limit_bytes=vmem_limit),
    )(x, w1, wslab, vec)


def reference_forward(x, lin, bn):
    """Pure-JAX reference with the exact PyTorch train-mode BN formula."""
    def bnorm(h, g, b):
        m = jnp.mean(h, axis=0, keepdims=True)
        v = jnp.mean((h - m) ** 2, axis=0, keepdims=True)
        return (h - m) / jnp.sqrt(v + EPS) * g + b

    h = x
    for i in range(N_BN):
        w, b = lin[i]
        h = bnorm(jnp.maximum(h @ w + b, 0.0), *bn[i])
    for i in range(N_BN, N_LIN - 1):
        w, b = lin[i]
        h = jnp.maximum(h @ w + b, 0.0)
    w, b = lin[N_LIN - 1]
    return jnp.tanh(h @ w + b)


if __name__ == "__main__":
    key = jax.random.PRNGKey(0)
    kx, kp = jax.random.split(key)
    batch = 8
    x = jax.random.normal(kx, (batch, DIMS[0]), jnp.float32)   # (8, 7)
    lin, bn = init_params(kp)
    ref = reference_forward(x, lin, bn)

    # f32 weights: exact module (train-mode BN) semantics.
    out = decoder_forward(x, pack_params(lin, bn, jnp.float32))
    jax.block_until_ready(out)
    assert out.shape == (batch, DIMS[-1]) and out.dtype == jnp.float32
    assert jnp.allclose(out, ref, atol=2e-3, rtol=2e-3), \
        float(jnp.max(jnp.abs(out - ref)))

    # bf16-weight fast path (recommended on v5e/v6e/v7x): checked against the f32
    # reference with a loose tolerance (bf16 operands perturb the BN batch stats).
    out_bf16 = decoder_forward(x, pack_params(lin, bn, jnp.bfloat16))
    jax.block_until_ready(out_bf16)
    assert bool(jnp.all(jnp.isfinite(out_bf16)))
    assert jnp.allclose(out_bf16, ref, atol=1e-1), \
        float(jnp.max(jnp.abs(out_bf16 - ref)))

    print("KERNEL_OK")
</pallas_src>

<mosaic_0001>
module attributes {stable_mosaic.version = 11 : i64} {
  func.func @decoder_kernel(%arg0: memref<8x8xf32, #tpu.memory_space<vmem>>, %arg1: memref<8x512xf32, #tpu.memory_space<vmem>>, %arg2: memref<760x128xf32, #tpu.memory_space<vmem>>, %arg3: memref<1x3072xf32, #tpu.memory_space<vmem>>, %arg4: memref<8x4xf32, #tpu.memory_space<vmem>>) attributes {dimension_semantics = [], scalar_prefetch = 0 : i64, scratch_operands = 0 : i64, tpu.core_type = #tpu.core_type<tc>} {
    %cst = arith.constant 1.000000e+00 : f32
    %0 = vector.broadcast %cst : f32 to vector<1x8xf32>
    %c0 = arith.constant 0 : index
    %c0_0 = arith.constant 0 : index
    %1 = vector.load %arg0[%c0, %c0_0] : memref<8x8xf32, #tpu.memory_space<vmem>>, vector<8x8xf32>
    %c0_1 = arith.constant 0 : index
    %c0_2 = arith.constant 0 : index
    %2 = vector.load %arg1[%c0_1, %c0_2] : memref<8x512xf32, #tpu.memory_space<vmem>>, vector<8x512xf32>
    %cst_3 = arith.constant dense<0.000000e+00> : vector<8x512xf32>
    %3 = tpu.matmul %1, %2, %cst_3 {dimension_numbers = #tpu.dot_dimension_numbers<[1], [0], [0], [1], [0, 0, 1, 1], [], []>} : vector<8x8xf32>, vector<8x512xf32>, vector<8x512xf32> -> vector<8x512xf32>
    %c0_4 = arith.constant 0 : index
    %c0_5 = arith.constant 0 : index
    %4 = vector.load %arg3[%c0_4, %c0_5] : memref<1x3072xf32, #tpu.memory_space<vmem>>, vector<1x512xf32>
    %5 = vector.broadcast %4 : vector<1x512xf32> to vector<8x512xf32>
    %6 = arith.addf %3, %5 : vector<8x512xf32>
    %cst_6 = arith.constant 0.000000e+00 : f32
    %7 = vector.broadcast %cst_6 : f32 to vector<8x512xf32>
    %8 = arith.maximumf %6, %7 : vector<8x512xf32>
    %cst_7 = arith.constant dense<0.000000e+00> : vector<1x512xf32>
    %9 = tpu.matmul %0, %8, %cst_7 {dimension_numbers = #tpu.dot_dimension_numbers<[1], [0], [0], [1], [0, 0, 1, 1], [], []>} : vector<1x8xf32>, vector<8x512xf32>, vector<1x512xf32> -> vector<1x512xf32>
    %10 = arith.mulf %8, %8 : vector<8x512xf32>
    %cst_8 = arith.constant dense<0.000000e+00> : vector<1x512xf32>
    %11 = tpu.matmul %0, %10, %cst_8 {dimension_numbers = #tpu.dot_dimension_numbers<[1], [0], [0], [1], [0, 0, 1, 1], [], []>} : vector<1x8xf32>, vector<8x512xf32>, vector<1x512xf32> -> vector<1x512xf32>
    %cst_9 = arith.constant 1.250000e-01 : f32
    %12 = vector.broadcast %cst_9 : f32 to vector<1x512xf32>
    %13 = arith.mulf %9, %12 : vector<1x512xf32>
    %cst_10 = arith.constant 1.250000e-01 : f32
    %14 = vector.broadcast %cst_10 : f32 to vector<1x512xf32>
    %15 = arith.mulf %11, %14 : vector<1x512xf32>
    %16 = arith.mulf %13, %13 : vector<1x512xf32>
    %17 = arith.subf %15, %16 : vector<1x512xf32>
    %cst_11 = arith.constant 0.000000e+00 : f32
    %18 = vector.broadcast %cst_11 : f32 to vector<1x512xf32>
    %19 = arith.maximumf %17, %18 : vector<1x512xf32>
    %c0_12 = arith.constant 0 : index
    %c1280 = arith.constant 1280 : index
    %20 = vector.load %arg3[%c0_12, %c1280] : memref<1x3072xf32, #tpu.memory_space<vmem>>, vector<1x512xf32>
    %cst_13 = arith.constant 9.99999974E-6 : f32
    %21 = vector.broadcast %cst_13 : f32 to vector<1x512xf32>
    %22 = arith.addf %19, %21 : vector<1x512xf32>
    %23 = math.rsqrt %22 : vector<1x512xf32>
    %24 = arith.mulf %20, %23 : vector<1x512xf32>
    %c0_14 = arith.constant 0 : index
    %c2176 = arith.constant 2176 : index
    %25 = vector.load %arg3[%c0_14, %c2176] : memref<1x3072xf32, #tpu.memory_space<vmem>>, vector<1x512xf32>
    %26 = arith.mulf %13, %24 : vector<1x512xf32>
    %27 = arith.subf %25, %26 : vector<1x512xf32>
    %28 = vector.broadcast %24 : vector<1x512xf32> to vector<8x512xf32>
    %29 = arith.mulf %8, %28 : vector<8x512xf32>
    %30 = vector.broadcast %27 : vector<1x512xf32> to vector<8x512xf32>
    %31 = arith.addf %29, %30 : vector<8x512xf32>
    %c0_15 = arith.constant 0 : index
    %c0_16 = arith.constant 0 : index
    %32 = vector.load %arg2[%c0_15, %c0_16] : memref<760x128xf32, #tpu.memory_space<vmem>>, vector<512x128xf32>
    %cst_17 = arith.constant dense<0.000000e+00> : vector<8x128xf32>
    %33 = tpu.matmul %31, %32, %cst_17 {dimension_numbers = #tpu.dot_dimension_numbers<[1], [0], [0], [1], [0, 0, 1, 1], [], []>} : vector<8x512xf32>, vector<512x128xf32>, vector<8x128xf32> -> vector<8x128xf32>
    %c0_18 = arith.constant 0 : index
    %c512 = arith.constant 512 : index
    %34 = vector.load %arg3[%c0_18, %c512] : memref<1x3072xf32, #tpu.memory_space<vmem>>, vector<1x128xf32>
    %35 = vector.broadcast %34 : vector<1x128xf32> to vector<8x128xf32>
    %36 = arith.addf %33, %35 : vector<8x128xf32>
    %cst_19 = arith.constant 0.000000e+00 : f32
    %37 = vector.broadcast %cst_19 : f32 to vector<8x128xf32>
    %38 = arith.maximumf %36, %37 : vector<8x128xf32>
    %cst_20 = arith.constant dense<0.000000e+00> : vector<1x128xf32>
    %39 = tpu.matmul %0, %38, %cst_20 {dimension_numbers = #tpu.dot_dimension_numbers<[1], [0], [0], [1], [0, 0, 1, 1], [], []>} : vector<1x8xf32>, vector<8x128xf32>, vector<1x128xf32> -> vector<1x128xf32>
    %40 = arith.mulf %38, %38 : vector<8x128xf32>
    %cst_21 = arith.constant dense<0.000000e+00> : vector<1x128xf32>
    %41 = tpu.matmul %0, %40, %cst_21 {dimension_numbers = #tpu.dot_dimension_numbers<[1], [0], [0], [1], [0, 0, 1, 1], [], []>} : vector<1x8xf32>, vector<8x128xf32>, vector<1x128xf32> -> vector<1x128xf32>
    %cst_22 = arith.constant 1.250000e-01 : f32
    %42 = vector.broadcast %cst_22 : f32 to vector<1x128xf32>
    %43 = arith.mulf %39, %42 : vector<1x128xf32>
    %cst_23 = arith.constant 1.250000e-01 : f32
    %44 = vector.broadcast %cst_23 : f32 to vector<1x128xf32>
    %45 = arith.mulf %41, %44 : vector<1x128xf32>
    %46 = arith.mulf %43, %43 : vector<1x128xf32>
    %47 = arith.subf %45, %46 : vector<1x128xf32>
    %cst_24 = arith.constant 0.000000e+00 : f32
    %48 = vector.broadcast %cst_24 : f32 to vector<1x128xf32>
    %49 = arith.maximumf %47, %48 : vector<1x128xf32>
    %c0_25 = arith.constant 0 : index
    %c1792 = arith.constant 1792 : index
    %50 = vector.load %arg3[%c0_25, %c1792] : memref<1x3072xf32, #tpu.memory_space<vmem>>, vector<1x128xf32>
    %cst_26 = arith.constant 9.99999974E-6 : f32
    %51 = vector.broadcast %cst_26 : f32 to vector<1x128xf32>
    %52 = arith.addf %49, %51 : vector<1x128xf32>
    %53 = math.rsqrt %52 : vector<1x128xf32>
    %54 = arith.mulf %50, %53 : vector<1x128xf32>
    %c0_27 = arith.constant 0 : index
    %c2688 = arith.constant 2688 : index
    %55 = vector.load %arg3[%c0_27, %c2688] : memref<1x3072xf32, #tpu.memory_space<vmem>>, vector<1x128xf32>
    %56 = arith.mulf %43, %54 : vector<1x128xf32>
    %57 = arith.subf %55, %56 : vector<1x128xf32>
    %58 = vector.broadcast %54 : vector<1x128xf32> to vector<8x128xf32>
    %59 = arith.mulf %38, %58 : vector<8x128xf32>
    %60 = vector.broadcast %57 : vector<1x128xf32> to vector<8x128xf32>
    %61 = arith.addf %59, %60 : vector<8x128xf32>
    %c512_28 = arith.constant 512 : index
    %c0_29 = arith.constant 0 : index
    %62 = vector.load %arg2[%c512_28, %c0_29] : memref<760x128xf32, #tpu.memory_space<vmem>>, vector<128x128xf32>
    %cst_30 = arith.constant dense<0.000000e+00> : vector<8x128xf32>
    %63 = tpu.matmul %61, %62, %cst_30 {dimension_numbers = #tpu.dot_dimension_numbers<[1], [0], [0], [1], [0, 0, 1, 1], [], []>} : vector<8x128xf32>, vector<128x128xf32>, vector<8x128xf32> -> vector<8x128xf32>
    %c0_31 = arith.constant 0 : index
    %c640 = arith.constant 640 : index
    %64 = vector.load %arg3[%c0_31, %c640] : memref<1x3072xf32, #tpu.memory_space<vmem>>, vector<1x128xf32>
    %65 = vector.broadcast %64 : vector<1x128xf32> to vector<8x128xf32>
    %66 = arith.addf %63, %65 : vector<8x128xf32>
    %cst_32 = arith.constant 0.000000e+00 : f32
    %67 = vector.broadcast %cst_32 : f32 to vector<8x128xf32>
    %68 = arith.maximumf %66, %67 : vector<8x128xf32>
    %cst_33 = arith.constant dense<0.000000e+00> : vector<1x128xf32>
    %69 = tpu.matmul %0, %68, %cst_33 {dimension_numbers = #tpu.dot_dimension_numbers<[1], [0], [0], [1], [0, 0, 1, 1], [], []>} : vector<1x8xf32>, vector<8x128xf32>, vector<1x128xf32> -> vector<1x128xf32>
    %70 = arith.mulf %68, %68 : vector<8x128xf32>
    %cst_34 = arith.constant dense<0.000000e+00> : vector<1x128xf32>
    %71 = tpu.matmul %0, %70, %cst_34 {dimension_numbers = #tpu.dot_dimension_numbers<[1], [0], [0], [1], [0, 0, 1, 1], [], []>} : vector<1x8xf32>, vector<8x128xf32>, vector<1x128xf32> -> vector<1x128xf32>
    %cst_35 = arith.constant 1.250000e-01 : f32
    %72 = vector.broadcast %cst_35 : f32 to vector<1x128xf32>
    %73 = arith.mulf %69, %72 : vector<1x128xf32>
    %cst_36 = arith.constant 1.250000e-01 : f32
    %74 = vector.broadcast %cst_36 : f32 to vector<1x128xf32>
    %75 = arith.mulf %71, %74 : vector<1x128xf32>
    %76 = arith.mulf %73, %73 : vector<1x128xf32>
    %77 = arith.subf %75, %76 : vector<1x128xf32>
    %cst_37 = arith.constant 0.000000e+00 : f32
    %78 = vector.broadcast %cst_37 : f32 to vector<1x128xf32>
    %79 = arith.maximumf %77, %78 : vector<1x128xf32>
    %c0_38 = arith.constant 0 : index
    %c1920 = arith.constant 1920 : index
    %80 = vector.load %arg3[%c0_38, %c1920] : memref<1x3072xf32, #tpu.memory_space<vmem>>, vector<1x128xf32>
    %cst_39 = arith.constant 9.99999974E-6 : f32
    %81 = vector.broadcast %cst_39 : f32 to vector<1x128xf32>
    %82 = arith.addf %79, %81 : vector<1x128xf32>
    %83 = math.rsqrt %82 : vector<1x128xf32>
    %84 = arith.mulf %80, %83 : vector<1x128xf32>
    %c0_40 = arith.constant 0 : index
    %c2816 = arith.constant 2816 : index
    %85 = vector.load %arg3[%c0_40, %c2816] : memref<1x3072xf32, #tpu.memory_space<vmem>>, vector<1x128xf32>
    %86 = arith.mulf %73, %84 : vector<1x128xf32>
    %87 = arith.subf %85, %86 : vector<1x128xf32>
    %88 = vector.broadcast %84 : vector<1x128xf32> to vector<8x128xf32>
    %89 = arith.mulf %68, %88 : vector<8x128xf32>
    %90 = vector.broadcast %87 : vector<1x128xf32> to vector<8x128xf32>
    %91 = arith.addf %89, %90 : vector<8x128xf32>
    %c640_41 = arith.constant 640 : index
    %c0_42 = arith.constant 0 : index
    %92 = vector.load %arg2[%c640_41, %c0_42] : memref<760x128xf32, #tpu.memory_space<vmem>>, vector<64x128xf32>
    %93 = vector.extract_strided_slice %91 {offsets = [0, 0], sizes = [8, 64], strides = [1, 1]} : vector<8x128xf32> to vector<8x64xf32>
    %cst_43 = arith.constant dense<0.000000e+00> : vector<8x128xf32>
    %94 = tpu.matmul %93, %92, %cst_43 {dimension_numbers = #tpu.dot_dimension_numbers<[1], [0], [0], [1], [0, 0, 1, 1], [], []>} : vector<8x64xf32>, vector<64x128xf32>, vector<8x128xf32> -> vector<8x128xf32>
    %c0_44 = arith.constant 0 : index
    %c768 = arith.constant 768 : index
    %95 = vector.load %arg3[%c0_44, %c768] : memref<1x3072xf32, #tpu.memory_space<vmem>>, vector<1x128xf32>
    %96 = vector.broadcast %95 : vector<1x128xf32> to vector<8x128xf32>
    %97 = arith.addf %94, %96 : vector<8x128xf32>
    %cst_45 = arith.constant 0.000000e+00 : f32
    %98 = vector.broadcast %cst_45 : f32 to vector<8x128xf32>
    %99 = arith.maximumf %97, %98 : vector<8x128xf32>
    %cst_46 = arith.constant dense<0.000000e+00> : vector<1x128xf32>
    %100 = tpu.matmul %0, %99, %cst_46 {dimension_numbers = #tpu.dot_dimension_numbers<[1], [0], [0], [1], [0, 0, 1, 1], [], []>} : vector<1x8xf32>, vector<8x128xf32>, vector<1x128xf32> -> vector<1x128xf32>
    %101 = arith.mulf %99, %99 : vector<8x128xf32>
    %cst_47 = arith.constant dense<0.000000e+00> : vector<1x128xf32>
    %102 = tpu.matmul %0, %101, %cst_47 {dimension_numbers = #tpu.dot_dimension_numbers<[1], [0], [0], [1], [0, 0, 1, 1], [], []>} : vector<1x8xf32>, vector<8x128xf32>, vector<1x128xf32> -> vector<1x128xf32>
    %cst_48 = arith.constant 1.250000e-01 : f32
    %103 = vector.broadcast %cst_48 : f32 to vector<1x128xf32>
    %104 = arith.mulf %100, %103 : vector<1x128xf32>
    %cst_49 = arith.constant 1.250000e-01 : f32
    %105 = vector.broadcast %cst_49 : f32 to vector<1x128xf32>
    %106 = arith.mulf %102, %105 : vector<1x128xf32>
    %107 = arith.mulf %104, %104 : vector<1x128xf32>
    %108 = arith.subf %106, %107 : vector<1x128xf32>
    %cst_50 = arith.constant 0.000000e+00 : f32
    %109 = vector.broadcast %cst_50 : f32 to vector<1x128xf32>
    %110 = arith.maximumf %108, %109 : vector<1x128xf32>
    %c0_51 = arith.constant 0 : index
    %c2048 = arith.constant 2048 : index
    %111 = vector.load %arg3[%c0_51, %c2048] : memref<1x3072xf32, #tpu.memory_space<vmem>>, vector<1x128xf32>
    %cst_52 = arith.constant 9.99999974E-6 : f32
    %112 = vector.broadcast %cst_52 : f32 to vector<1x128xf32>
    %113 = arith.addf %110, %112 : vector<1x128xf32>
    %114 = math.rsqrt %113 : vector<1x128xf32>
    %115 = arith.mulf %111, %114 : vector<1x128xf32>
    %c0_53 = arith.constant 0 : index
    %c2944 = arith.constant 2944 : index
    %116 = vector.load %arg3[%c0_53, %c2944] : memref<1x3072xf32, #tpu.memory_space<vmem>>, vector<1x128xf32>
    %117 = arith.mulf %104, %115 : vector<1x128xf32>
    %118 = arith.subf %116, %117 : vector<1x128xf32>
    %119 = vector.broadcast %115 : vector<1x128xf32> to vector<8x128xf32>
    %120 = arith.mulf %99, %119 : vector<8x128xf32>
    %121 = vector.broadcast %118 : vector<1x128xf32> to vector<8x128xf32>
    %122 = arith.addf %120, %121 : vector<8x128xf32>
    %c704 = arith.constant 704 : index
    %c0_54 = arith.constant 0 : index
    %123 = vector.load %arg2[%c704, %c0_54] : memref<760x128xf32, #tpu.memory_space<vmem>>, vector<32x128xf32>
    %124 = vector.extract_strided_slice %122 {offsets = [0, 0], sizes = [8, 32], strides = [1, 1]} : vector<8x128xf32> to vector<8x32xf32>
    %cst_55 = arith.constant dense<0.000000e+00> : vector<8x128xf32>
    %125 = tpu.matmul %124, %123, %cst_55 {dimension_numbers = #tpu.dot_dimension_numbers<[1], [0], [0], [1], [0, 0, 1, 1], [], []>} : vector<8x32xf32>, vector<32x128xf32>, vector<8x128xf32> -> vector<8x128xf32>
    %c0_56 = arith.constant 0 : index
    %c896 = arith.constant 896 : index
    %126 = vector.load %arg3[%c0_56, %c896] : memref<1x3072xf32, #tpu.memory_space<vmem>>, vector<1x128xf32>
    %127 = vector.broadcast %126 : vector<1x128xf32> to vector<8x128xf32>
    %128 = arith.addf %125, %127 : vector<8x128xf32>
    %cst_57 = arith.constant 0.000000e+00 : f32
    %129 = vector.broadcast %cst_57 : f32 to vector<8x128xf32>
    %130 = arith.maximumf %128, %129 : vector<8x128xf32>
    %c736 = arith.constant 736 : index
    %c0_58 = arith.constant 0 : index
    %131 = vector.load %arg2[%c736, %c0_58] : memref<760x128xf32, #tpu.memory_space<vmem>>, vector<16x128xf32>
    %132 = vector.extract_strided_slice %130 {offsets = [0, 0], sizes = [8, 16], strides = [1, 1]} : vector<8x128xf32> to vector<8x16xf32>
    %cst_59 = arith.constant dense<0.000000e+00> : vector<8x128xf32>
    %133 = tpu.matmul %132, %131, %cst_59 {dimension_numbers = #tpu.dot_dimension_numbers<[1], [0], [0], [1], [0, 0, 1, 1], [], []>} : vector<8x16xf32>, vector<16x128xf32>, vector<8x128xf32> -> vector<8x128xf32>
    %c0_60 = arith.constant 0 : index
    %c1024 = arith.constant 1024 : index
    %134 = vector.load %arg3[%c0_60, %c1024] : memref<1x3072xf32, #tpu.memory_space<vmem>>, vector<1x128xf32>
    %135 = vector.broadcast %134 : vector<1x128xf32> to vector<8x128xf32>
    %136 = arith.addf %133, %135 : vector<8x128xf32>
    %cst_61 = arith.constant 0.000000e+00 : f32
    %137 = vector.broadcast %cst_61 : f32 to vector<8x128xf32>
    %138 = arith.maximumf %136, %137 : vector<8x128xf32>
    %c752 = arith.constant 752 : index
    %c0_62 = arith.constant 0 : index
    %139 = vector.load %arg2[%c752, %c0_62] : memref<760x128xf32, #tpu.memory_space<vmem>>, vector<8x128xf32>
    %140 = vector.extract_strided_slice %138 {offsets = [0, 0], sizes = [8, 8], strides = [1, 1]} : vector<8x128xf32> to vector<8x8xf32>
    %cst_63 = arith.constant dense<0.000000e+00> : vector<8x128xf32>
    %141 = tpu.matmul %140, %139, %cst_63 {dimension_numbers = #tpu.dot_dimension_numbers<[1], [0], [0], [1], [0, 0, 1, 1], [], []>} : vector<8x8xf32>, vector<8x128xf32>, vector<8x128xf32> -> vector<8x128xf32>
    %c0_64 = arith.constant 0 : index
    %c1152 = arith.constant 1152 : index
    %142 = vector.load %arg3[%c0_64, %c1152] : memref<1x3072xf32, #tpu.memory_space<vmem>>, vector<1x128xf32>
    %143 = vector.broadcast %142 : vector<1x128xf32> to vector<8x128xf32>
    %144 = arith.addf %141, %143 : vector<8x128xf32>
    %145 = vector.extract_strided_slice %144 {offsets = [0, 0], sizes = [8, 4], strides = [1, 1]} : vector<8x128xf32> to vector<8x4xf32>
    %146 = math.tanh %145 : vector<8x4xf32>
    %c0_65 = arith.constant 0 : index
    %c0_66 = arith.constant 0 : index
    %147 = vector.load %arg4[%c0_65, %c0_66] : memref<8x4xf32, #tpu.memory_space<vmem>>, vector<8x4xf32>
    tpu.vector_store %arg4[%c0_65, %c0_66], %146 {strides = array<i32>} : memref<8x4xf32, #tpu.memory_space<vmem>>, vector<8x4xf32>,
    return
  }
}

</mosaic_0001>

<llo_original>
// kernel: tpu_custom_call.1
$region0: #{tpu_custom_call.1}
  #allocation0 [shape = 'u32[]', space=smem, size = 0x4, offset = 0x4, fixed_abs, tag = 'smem constant byte address 0x4 - core index']
  #allocation1 [shape = 'u32[72,128]{1,0:T(1,128)}', space=vmem, size = 0x9000, scoped, tag = 'internal scratch']
  %s0 = inlined_call_operand.hbm [shape: f32[8,8], index: 0, kind: input, shape index: {}]
  %s1 = inlined_call_operand.hbm [shape: f32[8,512], index: 1, kind: input, shape index: {}]
  %s2 = inlined_call_operand.hbm [shape: f32[760,128], index: 2, kind: input, shape index: {}]
  %s3 = inlined_call_operand.hbm [shape: f32[1,3072], index: 3, kind: input, shape index: {}]
  %s4 = inlined_call_operand.vmem [shape: f32[8,4], index: 4, kind: output, shape index: {}]
  %s5 = sld [smem:[#allocation0]]
  $region42: #{tpu_custom_call.1} parent=0
    _
  %s7 = ssub.s32 1, %s5
  %s8 = scalar_select 0, %s7, %s5
  $region1: #{tpu_custom_call.1} parent=0
    #allocation2 [shape = 'u8[4096]{0}', space=vmem, size = 0x1000, scoped, tag = 'input window, operand 0, single buffered']
    #allocation3 [shape = 's32[1]{0}', space=sflag, size = 0x4, scoped, tag = 'scoped memory for tpu_custom_call.1']
    #allocation4 [shape = 'u8[16384]{0}', space=vmem, size = 0x4000, scoped, tag = 'input window, operand 1, single buffered']
    #allocation5 [shape = 's32[1]{0}', space=sflag, size = 0x4, scoped, tag = 'scoped memory for tpu_custom_call.1']
    #allocation6 [shape = 'u8[389120]{0}', space=vmem, size = 0x5f000, scoped, tag = 'input window, operand 2, single buffered']
    #allocation7 [shape = 'u8[12288]{0}', space=vmem, size = 0x3000, scoped, tag = 'input window, operand 3, single buffered']
    #allocation8 [shape = 's32[1]{0}', space=sflag, size = 0x4, scoped, tag = 'scoped memory for tpu_custom_call.1']
    %9 = vsyncpa [#allocation3], 0
    %10 = vsyncpa [#allocation5], 0
    %11 = vsyncpa [#allocation8], 0
    // Predicated region
    $region2: #{tpu_custom_call.1} parent=1 // pred_check
      _
    $region3: #{tpu_custom_call.1} parent=1 // pred_check_branch
      %13 = sbr.rel (0) target = $region5
    $region4: #{tpu_custom_call.1} parent=1 // pred_region
      %15 = vsyncadd [#allocation3], 0
      %s17 = sshll.u32 %s0, 4
      %s18 = int_to_ptr.hbm [resolvable:$true] %s17
      %s19 = sshll.u32 [#allocation2], 4
      %s20 = int_to_ptr.vmem [resolvable:$true] %s19
      %22 = dma.hbm_to_vmem [thread:$0]  %s18, 128, %s20, [#allocation3]
    $region5: #{tpu_custom_call.1} parent=1 // pred_fallthru
      _
    // Predicated region
    $region6: #{tpu_custom_call.1} parent=1 // pred_check
      _
    $region7: #{tpu_custom_call.1} parent=1 // pred_check_branch
      %24 = sbr.rel (0) target = $region9
    $region8: #{tpu_custom_call.1} parent=1 // pred_region
      %26 = vsyncadd [#allocation5], 0
      %s28 = sshll.u32 %s1, 4
      %s29 = int_to_ptr.hbm [resolvable:$true] %s28
      %s30 = sshll.u32 [#allocation4], 4
      %s31 = int_to_ptr.vmem [resolvable:$true] %s30
      %33 = dma.hbm_to_vmem [thread:$0]  %s29, 512, %s31, [#allocation5]
    $region9: #{tpu_custom_call.1} parent=1 // pred_fallthru
      _
    // Predicated region
    $region10: #{tpu_custom_call.1} parent=1 // pred_check
      _
    $region11: #{tpu_custom_call.1} parent=1 // pred_check_branch
      %35 = sbr.rel (0) target = $region13
    $region12: #{tpu_custom_call.1} parent=1 // pred_region
      %37 = vsyncadd [#allocation5], 0
      %s38 = sshll.u32 %s2, 4
      %s39 = int_to_ptr.hbm [resolvable:$true] %s38
      %s40 = sshll.u32 [#allocation6], 4
      %s41 = int_to_ptr.vmem [resolvable:$true] %s40
      %46 = dma.hbm_to_vmem [thread:$0]  %s39, 12160, %s41, [#allocation5], 128, 128, 8
    $region13: #{tpu_custom_call.1} parent=1 // pred_fallthru
      _
    // Predicated region
    $region14: #{tpu_custom_call.1} parent=1 // pred_check
      _
    $region15: #{tpu_custom_call.1} parent=1 // pred_check_branch
      %48 = sbr.rel (0) target = $region17
    $region16: #{tpu_custom_call.1} parent=1 // pred_region
      %50 = vsyncadd [#allocation8], 0
      %s52 = sshll.u32 %s3, 4
      %s53 = int_to_ptr.hbm [resolvable:$true] %s52
      %s54 = sshll.u32 [#allocation7], 4
      %s55 = int_to_ptr.vmem [resolvable:$true] %s54
      %57 = dma.hbm_to_vmem [thread:$0]  %s53, 384, %s55, [#allocation8]
    $region17: #{tpu_custom_call.1} parent=1 // pred_fallthru
      _
    // Predicated region
    $region18: #{tpu_custom_call.1} parent=1 // pred_check
      _
    $region19: #{tpu_custom_call.1} parent=1 // pred_check_branch
      %59 = sbr.rel (0) target = $region21
    $region20: #{tpu_custom_call.1} parent=1 // pred_region
      %61 = dma.done [#allocation3], 128
    $region21: #{tpu_custom_call.1} parent=1 // pred_fallthru
      _
    // Predicated region
    $region22: #{tpu_custom_call.1} parent=1 // pred_check
      _
    $region23: #{tpu_custom_call.1} parent=1 // pred_check_branch
      %63 = sbr.rel (0) target = $region25
    $region24: #{tpu_custom_call.1} parent=1 // pred_region
      %65 = dma.done [#allocation5], 512
    $region25: #{tpu_custom_call.1} parent=1 // pred_fallthru
      _
    // Predicated region
    $region26: #{tpu_custom_call.1} parent=1 // pred_check
      _
    $region27: #{tpu_custom_call.1} parent=1 // pred_check_branch
      %67 = sbr.rel (0) target = $region29
    $region28: #{tpu_custom_call.1} parent=1 // pred_region
      %69 = dma.done [#allocation5], 12160
    $region29: #{tpu_custom_call.1} parent=1 // pred_fallthru
      _
    // Predicated region
    $region30: #{tpu_custom_call.1} parent=1 // pred_check
      _
    $region31: #{tpu_custom_call.1} parent=1 // pred_check_branch
      %71 = sbr.rel (0) target = $region33
    $region32: #{tpu_custom_call.1} parent=1 // pred_region
      %73 = dma.done [#allocation8], 384
    $region33: #{tpu_custom_call.1} parent=1 // pred_fallthru
      _
    %v74 = vld [vmem:[#allocation2] sm:$0xff]
    %v75 = vld [vmem:[#allocation4] sm:$0xff]
    %v76 = vld [vmem:[#allocation4 + $0x8] sm:$0xff]
    %v77 = vld [vmem:[#allocation4 + $0x10] sm:$0xff]
    %v78 = vld [vmem:[#allocation4 + $0x18] sm:$0xff]
    %v79 = vld [vmem:[#allocation7] sm:$0xf]
    %v81 = vperm.slane %v79, 0
    %v82 = vperm.slane %v79, 1
    %v83 = vperm.slane %v79, 2
    %v84 = vperm.slane %v79, 3
    %vm89 = vcmask 64512
    %v91 = vsel %vm89, %v74, 0
    %93 = vmatpush.msra.mxu0 0.0
    %94 = vmatpush.msra.mxu0 0.0
    %95 = vmatpush.msra.mxu0 0.0
    %96 = vmatpush.msra.mxu0 0.0
    %97 = vmatpush.msra.mxu0 0.0
    %98 = vmatpush.msra.mxu0 0.0
    %99 = vmatpush.msra.mxu0 0.0
    %100 = vmatpush.msra.mxu0 0.0
    %101 = vmatpush.msra.mxu0 0.0
    %102 = vmatpush.msra.mxu0 0.0
    %103 = vmatpush.msra.mxu0 0.0
    %104 = vmatpush.msra.mxu0 0.0
    %105 = vmatpush.msra.mxu0 0.0
    %106 = vmatpush.msra.mxu0 0.0
    %107 = vmatpush.msra.mxu0 0.0
    %108 = vmatpush.msra.mxu0 %v75
    %109 = vmatmul.f32.gmra.mxu0 %v91
    %v110 = vpop.f32.mrf.mxu0
    %v111 = vadd.f32 %v81, %v110
    %112 = vdwg.mxu0
    %113 = vmatpush.msra.mxu0 0.0
    %114 = vmatpush.msra.mxu0 0.0
    %115 = vmatpush.msra.mxu0 0.0
    %116 = vmatpush.msra.mxu0 0.0
    %117 = vmatpush.msra.mxu0 0.0
    %118 = vmatpush.msra.mxu0 0.0
    %119 = vmatpush.msra.mxu0 0.0
    %120 = vmatpush.msra.mxu0 0.0
    %121 = vmatpush.msra.mxu0 0.0
    %122 = vmatpush.msra.mxu0 0.0
    %123 = vmatpush.msra.mxu0 0.0
    %124 = vmatpush.msra.mxu0 0.0
    %125 = vmatpush.msra.mxu0 0.0
    %126 = vmatpush.msra.mxu0 0.0
    %127 = vmatpush.msra.mxu0 0.0
    %128 = vmatpush.msra.mxu0 %v76
    %129 = vmatmul.f32.gmra.mxu0 %v91
    %v130 = vpop.f32.mrf.mxu0
    %v131 = vadd.f32 %v82, %v130
    %132 = vdwg.mxu0
    %133 = vmatpush.msra.mxu0 0.0
    %134 = vmatpush.msra.mxu0 0.0
    %135 = vmatpush.msra.mxu0 0.0
    %136 = vmatpush.msra.mxu0 0.0
    %137 = vmatpush.msra.mxu0 0.0
    %138 = vmatpush.msra.mxu0 0.0
    %139 = vmatpush.msra.mxu0 0.0
    %140 = vmatpush.msra.mxu0 0.0
    %141 = vmatpush.msra.mxu0 0.0
    %142 = vmatpush.msra.mxu0 0.0
    %143 = vmatpush.msra.mxu0 0.0
    %144 = vmatpush.msra.mxu0 0.0
    %145 = vmatpush.msra.mxu0 0.0
    %146 = vmatpush.msra.mxu0 0.0
    %147 = vmatpush.msra.mxu0 0.0
    %148 = vmatpush.msra.mxu0 %v77
    %149 = vmatmul.f32.gmra.mxu0 %v91
    %v150 = vpop.f32.mrf.mxu0
    %v151 = vadd.f32 %v83, %v150
    %152 = vdwg.mxu0
    %153 = vmatpush.msra.mxu0 0.0
    %154 = vmatpush.msra.mxu0 0.0
    %155 = vmatpush.msra.mxu0 0.0
    %156 = vmatpush.msra.mxu0 0.0
    %157 = vmatpush.msra.mxu0 0.0
    %158 = vmatpush.msra.mxu0 0.0
    %159 = vmatpush.msra.mxu0 0.0
    %160 = vmatpush.msra.mxu0 0.0
    %161 = vmatpush.msra.mxu0 0.0
    %162 = vmatpush.msra.mxu0 0.0
    %163 = vmatpush.msra.mxu0 0.0
    %164 = vmatpush.msra.mxu0 0.0
    %165 = vmatpush.msra.mxu0 0.0
    %166 = vmatpush.msra.mxu0 0.0
    %167 = vmatpush.msra.mxu0 0.0
    %168 = vmatpush.msra.mxu0 %v78
    %169 = vmatmul.f32.gmra.mxu0 %v91
    %v170 = vpop.f32.mrf.mxu0
    %v171 = vadd.f32 %v84, %v170
    %172 = vdwg.mxu0
    %v173 = vmax.f32 %v111, 0.0
    %v174 = vmax.f32 %v131, 0.0
    %v175 = vmax.f32 %v151, 0.0
    %v176 = vmax.f32 %v171, 0.0
    %v178 = vsel %vm89, 1.0, 0
    %180 = vmatpush.msra.mxu0 0.0
    %181 = vmatpush.msra.mxu0 0.0
    %182 = vmatpush.msra.mxu0 0.0
    %183 = vmatpush.msra.mxu0 0.0
    %184 = vmatpush.msra.mxu0 0.0
    %185 = vmatpush.msra.mxu0 0.0
    %186 = vmatpush.msra.mxu0 0.0
    %187 = vmatpush.msra.mxu0 0.0
    %188 = vmatpush.msra.mxu0 0.0
    %189 = vmatpush.msra.mxu0 0.0
    %190 = vmatpush.msra.mxu0 0.0
    %191 = vmatpush.msra.mxu0 0.0
    %192 = vmatpush.msra.mxu0 0.0
    %193 = vmatpush.msra.mxu0 0.0
    %194 = vmatpush.msra.mxu0 0.0
    %195 = vmatpush.msra.mxu0 %v173
    %196 = vmatmul.f32.gmra.mxu0 %v178
    %v197 = vpop.f32.mrf.mxu0
    %v198 = vadd.f32 0.0, %v197
    %199 = vdwg.mxu0
    %200 = vmatpush.msra.mxu0 0.0
    %201 = vmatpush.msra.mxu0 0.0
    %202 = vmatpush.msra.mxu0 0.0
    %203 = vmatpush.msra.mxu0 0.0
    %204 = vmatpush.msra.mxu0 0.0
    %205 = vmatpush.msra.mxu0 0.0
    %206 = vmatpush.msra.mxu0 0.0
    %207 = vmatpush.msra.mxu0 0.0
    %208 = vmatpush.msra.mxu0 0.0
    %209 = vmatpush.msra.mxu0 0.0
    %210 = vmatpush.msra.mxu0 0.0
    %211 = vmatpush.msra.mxu0 0.0
    %212 = vmatpush.msra.mxu0 0.0
    %213 = vmatpush.msra.mxu0 0.0
    %214 = vmatpush.msra.mxu0 0.0
    %215 = vmatpush.msra.mxu0 %v174
    %216 = vmatmul.f32.gmra.mxu0 %v178
    %v217 = vpop.f32.mrf.mxu0
    %v218 = vadd.f32 0.0, %v217
    %219 = vdwg.mxu0
    %220 = vmatpush.msra.mxu0 0.0
    %221 = vmatpush.msra.mxu0 0.0
    %222 = vmatpush.msra.mxu0 0.0
    %223 = vmatpush.msra.mxu0 0.0
    %224 = vmatpush.msra.mxu0 0.0
    %225 = vmatpush.msra.mxu0 0.0
    %226 = vmatpush.msra.mxu0 0.0
    %227 = vmatpush.msra.mxu0 0.0
    %228 = vmatpush.msra.mxu0 0.0
    %229 = vmatpush.msra.mxu0 0.0
    %230 = vmatpush.msra.mxu0 0.0
    %231 = vmatpush.msra.mxu0 0.0
    %232 = vmatpush.msra.mxu0 0.0
    %233 = vmatpush.msra.mxu0 0.0
    %234 = vmatpush.msra.mxu0 0.0
    %235 = vmatpush.msra.mxu0 %v175
    %236 = vmatmul.f32.gmra.mxu0 %v178
    %v237 = vpop.f32.mrf.mxu0
    %v238 = vadd.f32 0.0, %v237
    %239 = vdwg.mxu0
    %240 = vmatpush.msra.mxu0 0.0
    %241 = vmatpush.msra.mxu0 0.0
    %242 = vmatpush.msra.mxu0 0.0
    %243 = vmatpush.msra.mxu0 0.0
    %244 = vmatpush.msra.mxu0 0.0
    %245 = vmatpush.msra.mxu0 0.0
    %246 = vmatpush.msra.mxu0 0.0
    %247 = vmatpush.msra.mxu0 0.0
    %248 = vmatpush.msra.mxu0 0.0
    %249 = vmatpush.msra.mxu0 0.0
    %250 = vmatpush.msra.mxu0 0.0
    %251 = vmatpush.msra.mxu0 0.0
    %252 = vmatpush.msra.mxu0 0.0
    %253 = vmatpush.msra.mxu0 0.0
    %254 = vmatpush.msra.mxu0 0.0
    %255 = vmatpush.msra.mxu0 %v176
    %256 = vmatmul.f32.gmra.mxu0 %v178
    %v257 = vpop.f32.mrf.mxu0
    %v258 = vadd.f32 0.0, %v257
    %259 = vdwg.mxu0
    %v260 = vmul.f32 %v173, %v173
    %v261 = vmul.f32 %v174, %v174
    %v262 = vmul.f32 %v175, %v175
    %v263 = vmul.f32 %v176, %v176
    %264 = vmatpush.msra.mxu0 0.0
    %265 = vmatpush.msra.mxu0 0.0
    %266 = vmatpush.msra.mxu0 0.0
    %267 = vmatpush.msra.mxu0 0.0
    %268 = vmatpush.msra.mxu0 0.0
    %269 = vmatpush.msra.mxu0 0.0
    %270 = vmatpush.msra.mxu0 0.0
    %271 = vmatpush.msra.mxu0 0.0
    %272 = vmatpush.msra.mxu0 0.0
    %273 = vmatpush.msra.mxu0 0.0
    %274 = vmatpush.msra.mxu0 0.0
    %275 = vmatpush.msra.mxu0 0.0
    %276 = vmatpush.msra.mxu0 0.0
    %277 = vmatpush.msra.mxu0 0.0
    %278 = vmatpush.msra.mxu0 0.0
    %279 = vmatpush.msra.mxu0 %v260
    %280 = vmatmul.f32.gmra.mxu0 %v178
    %v281 = vpop.f32.mrf.mxu0
    %v282 = vadd.f32 0.0, %v281
    %283 = vdwg.mxu0
    %284 = vmatpush.msra.mxu0 0.0
    %285 = vmatpush.msra.mxu0 0.0
    %286 = vmatpush.msra.mxu0 0.0
    %287 = vmatpush.msra.mxu0 0.0
    %288 = vmatpush.msra.mxu0 0.0
    %289 = vmatpush.msra.mxu0 0.0
    %290 = vmatpush.msra.mxu0 0.0
    %291 = vmatpush.msra.mxu0 0.0
    %292 = vmatpush.msra.mxu0 0.0
    %293 = vmatpush.msra.mxu0 0.0
    %294 = vmatpush.msra.mxu0 0.0
    %295 = vmatpush.msra.mxu0 0.0
    %296 = vmatpush.msra.mxu0 0.0
    %297 = vmatpush.msra.mxu0 0.0
    %298 = vmatpush.msra.mxu0 0.0
    %299 = vmatpush.msra.mxu0 %v261
    %300 = vmatmul.f32.gmra.mxu0 %v178
    %v301 = vpop.f32.mrf.mxu0
    %v302 = vadd.f32 0.0, %v301
    %303 = vdwg.mxu0
    %304 = vmatpush.msra.mxu0 0.0
    %305 = vmatpush.msra.mxu0 0.0
    %306 = vmatpush.msra.mxu0 0.0
    %307 = vmatpush.msra.mxu0 0.0
    %308 = vmatpush.msra.mxu0 0.0
    %309 = vmatpush.msra.mxu0 0.0
    %310 = vmatpush.msra.mxu0 0.0
    %311 = vmatpush.msra.mxu0 0.0
    %312 = vmatpush.msra.mxu0 0.0
    %313 = vmatpush.msra.mxu0 0.0
    %314 = vmatpush.msra.mxu0 0.0
    %315 = vmatpush.msra.mxu0 0.0
    %316 = vmatpush.msra.mxu0 0.0
    %317 = vmatpush.msra.mxu0 0.0
    %318 = vmatpush.msra.mxu0 0.0
    %319 = vmatpush.msra.mxu0 %v262
    %320 = vmatmul.f32.gmra.mxu0 %v178
    %v321 = vpop.f32.mrf.mxu0
    %v322 = vadd.f32 0.0, %v321
    %323 = vdwg.mxu0
    %324 = vmatpush.msra.mxu0 0.0
    %325 = vmatpush.msra.mxu0 0.0
    %326 = vmatpush.msra.mxu0 0.0
    %327 = vmatpush.msra.mxu0 0.0
    %328 = vmatpush.msra.mxu0 0.0
    %329 = vmatpush.msra.mxu0 0.0
    %330 = vmatpush.msra.mxu0 0.0
    %331 = vmatpush.msra.mxu0 0.0
    %332 = vmatpush.msra.mxu0 0.0
    %333 = vmatpush.msra.mxu0 0.0
    %334 = vmatpush.msra.mxu0 0.0
    %335 = vmatpush.msra.mxu0 0.0
    %336 = vmatpush.msra.mxu0 0.0
    %337 = vmatpush.msra.mxu0 0.0
    %338 = vmatpush.msra.mxu0 0.0
    %339 = vmatpush.msra.mxu0 %v263
    %340 = vmatmul.f32.gmra.mxu0 %v178
    %v341 = vpop.f32.mrf.mxu0
    %v342 = vadd.f32 0.0, %v341
    %343 = vdwg.mxu0
    %v344 = vmul.f32 %v198, 0.125
    %v345 = vmul.f32 %v218, 0.125
    %v346 = vmul.f32 %v238, 0.125
    %v347 = vmul.f32 %v258, 0.125
    %v348 = vmul.f32 %v282, 0.125
    %v349 = vmul.f32 %v302, 0.125
    %v350 = vmul.f32 %v322, 0.125
    %v351 = vmul.f32 %v342, 0.125
    %v352 = vmul.f32 %v344, %v344
    %v353 = vmul.f32 %v345, %v345
    %v354 = vmul.f32 %v346, %v346
    %v355 = vmul.f32 %v347, %v347
    %v356 = vsub.f32 %v348, %v352
    %v357 = vsub.f32 %v349, %v353
    %v358 = vsub.f32 %v350, %v354
    %v359 = vsub.f32 %v351, %v355
    %v360 = vmax.f32 %v356, 0.0
    %v361 = vmax.f32 %v357, 0.0
    %v362 = vmax.f32 %v358, 0.0
    %v363 = vmax.f32 %v359, 0.0
    %v364 = vld [vmem:[#allocation7 + $0xa] sm:$0xf]
    %v365 = vadd.f32 %v360, 1e-05
    %v366 = vadd.f32 %v361, 1e-05
    %v367 = vadd.f32 %v362, 1e-05
    %v368 = vadd.f32 %v363, 1e-05
    %v369 = vrsqrt.pop %v365
    %v370 = vmul.f32 %v369, %v365
    %v371 = vmul.f32 %v370, %v369
    %v372 = vmul.f32 0.5, %v371
    %v373 = vsub.f32 1.5, %v372
    %v374 = vmul.f32 %v369, %v373
    %vm375 = vweird.f32 %v365
    %vm376 = vweird.f32 %v369
    %vm377 = vmor %vm375, %vm376
    %v378 = vsel %vm377, %v369, %v374
    %v379 = vrsqrt.pop %v366
    %v380 = vmul.f32 %v379, %v366
    %v381 = vmul.f32 %v380, %v379
    %v382 = vmul.f32 0.5, %v381
    %v383 = vsub.f32 1.5, %v382
    %v384 = vmul.f32 %v379, %v383
    %vm385 = vweird.f32 %v366
    %vm386 = vweird.f32 %v379
    %vm387 = vmor %vm385, %vm386
    %v388 = vsel %vm387, %v379, %v384
    %v389 = vrsqrt.pop %v367
    %v390 = vmul.f32 %v389, %v367
    %v391 = vmul.f32 %v390, %v389
    %v392 = vmul.f32 0.5, %v391
    %v393 = vsub.f32 1.5, %v392
    %v394 = vmul.f32 %v389, %v393
    %vm395 = vweird.f32 %v367
    %vm396 = vweird.f32 %v389
    %vm397 = vmor %vm395, %vm396
    %v398 = vsel %vm397, %v389, %v394
    %v399 = vrsqrt.pop %v368
    %v400 = vmul.f32 %v399, %v368
    %v401 = vmul.f32 %v400, %v399
    %v402 = vmul.f32 0.5, %v401
    %v403 = vsub.f32 1.5, %v402
    %v404 = vmul.f32 %v399, %v403
    %vm405 = vweird.f32 %v368
    %vm406 = vweird.f32 %v399
    %vm407 = vmor %vm405, %vm406
    %v408 = vsel %vm407, %v399, %v404
    %v413 = vrot.slane %v388, 7
    %v414 = vrot.slane %v398, 6
    %v415 = vrot.slane %v408, 5
    %vm416 = vcmask 1040384
    %v417 = vsel %vm416, %v378, %v413
    %vm418 = vcmask 1042434
    %v419 = vsel %vm418, %v414, %v415
    %vm420 = vcmask 1041408
    %v421 = vsel %vm420, %v417, %v419
    %v423 = vmul.f32 %v364, %v421
    %v424 = vld [vmem:[#allocation7 + $0x11] sm:$0xf]
    %v426 = vperm.slane %v423, 0
    %v427 = vperm.slane %v423, 1
    %v428 = vperm.slane %v423, 2
    %v429 = vperm.slane %v423, 3
    %v434 = vmul.f32 %v344, %v426
    %v435 = vmul.f32 %v345, %v427
    %v436 = vmul.f32 %v346, %v428
    %v437 = vmul.f32 %v347, %v429
    %v442 = vrot.slane %v435, 7
    %v443 = vrot.slane %v436, 6
    %v444 = vrot.slane %v437, 5
    %v445 = vsel %vm416, %v434, %v442
    %v446 = vsel %vm418, %v443, %v444
    %v447 = vsel %vm420, %v445, %v446
    %v449 = vsub.f32 %v424, %v447
    %v450 = vmul.f32 %v173, %v426
    %v451 = vmul.f32 %v174, %v427
    %v452 = vmul.f32 %v175, %v428
    %v453 = vmul.f32 %v176, %v429
    %v455 = vperm.slane %v449, 0
    %v456 = vperm.slane %v449, 1
    %v457 = vperm.slane %v449, 2
    %v458 = vperm.slane %v449, 3
    %v463 = vadd.f32 %v450, %v455
    %v464 = vadd.f32 %v451, %v456
    %v465 = vadd.f32 %v452, %v457
    %v466 = vadd.f32 %v453, %v458
    %v467 = vld [vmem:[#allocation6] sm:$0xff]
    %v468 = vld [vmem:[#allocation6 + $0x8] sm:$0xff]
    %v469 = vld [vmem:[#allocation6 + $0x10] sm:$0xff]
    %v470 = vld [vmem:[#allocation6 + $0x18] sm:$0xff]
    %v471 = vld [vmem:[#allocation6 + $0x20] sm:$0xff]
    %v472 = vld [vmem:[#allocation6 + $0x28] sm:$0xff]
    %v473 = vld [vmem:[#allocation6 + $0x30] sm:$0xff]
    %v474 = vld [vmem:[#allocation6 + $0x38] sm:$0xff]
    %v475 = vld [vmem:[#allocation6 + $0x40] sm:$0xff]
    %v476 = vld [vmem:[#allocation6 + $0x48] sm:$0xff]
    %v477 = vld [vmem:[#allocation6 + $0x50] sm:$0xff]
    %v478 = vld [vmem:[#allocation6 + $0x58] sm:$0xff]
    %v479 = vld [vmem:[#allocation6 + $0x60] sm:$0xff]
    %v480 = vld [vmem:[#allocation6 + $0x68] sm:$0xff]
    %v481 = vld [vmem:[#allocation6 + $0x70] sm:$0xff]
    %v482 = vld [vmem:[#allocation6 + $0x78] sm:$0xff]
    %v483 = vld [vmem:[#allocation6 + $0x80] sm:$0xff]
    %v484 = vld [vmem:[#allocation6 + $0x88] sm:$0xff]
    %v485 = vld [vmem:[#allocation6 + $0x90] sm:$0xff]
    %v486 = vld [vmem:[#allocation6 + $0x98] sm:$0xff]
    %v487 = vld [vmem:[#allocation6 + $0xa0] sm:$0xff]
    %v488 = vld [vmem:[#allocation6 + $0xa8] sm:$0xff]
    %v489 = vld [vmem:[#allocation6 + $0xb0] sm:$0xff]
    %v490 = vld [vmem:[#allocation6 + $0xb8] sm:$0xff]
    %v491 = vld [vmem:[#allocation6 + $0xc0] sm:$0xff]
    %v492 = vld [vmem:[#allocation6 + $0xc8] sm:$0xff]
    %v493 = vld [vmem:[#allocation6 + $0xd0] sm:$0xff]
    %v494 = vld [vmem:[#allocation6 + $0xd8] sm:$0xff]
    %v495 = vld [vmem:[#allocation6 + $0xe0] sm:$0xff]
    %v496 = vld [vmem:[#allocation6 + $0xe8] sm:$0xff]
    %v497 = vld [vmem:[#allocation6 + $0xf0] sm:$0xff]
    %v498 = vld [vmem:[#allocation6 + $0xf8] sm:$0xff]
    %v499 = vld [vmem:[#allocation6 + $0x100] sm:$0xff]
    %v500 = vld [vmem:[#allocation6 + $0x108] sm:$0xff]
    %v501 = vld [vmem:[#allocation6 + $0x110] sm:$0xff]
    %v502 = vld [vmem:[#allocation6 + $0x118] sm:$0xff]
    %v503 = vld [vmem:[#allocation6 + $0x120] sm:$0xff]
    %v504 = vld [vmem:[#allocation6 + $0x128] sm:$0xff]
    %v505 = vld [vmem:[#allocation6 + $0x130] sm:$0xff]
    %v506 = vld [vmem:[#allocation6 + $0x138] sm:$0xff]
    %v507 = vld [vmem:[#allocation6 + $0x140] sm:$0xff]
    %v508 = vld [vmem:[#allocation6 + $0x148] sm:$0xff]
    %v509 = vld [vmem:[#allocation6 + $0x150] sm:$0xff]
    %v510 = vld [vmem:[#allocation6 + $0x158] sm:$0xff]
    %v511 = vld [vmem:[#allocation6 + $0x160] sm:$0xff]
    %v512 = vld [vmem:[#allocation6 + $0x168] sm:$0xff]
    %v513 = vld [vmem:[#allocation6 + $0x170] sm:$0xff]
    %v514 = vld [vmem:[#allocation6 + $0x178] sm:$0xff]
    %v515 = vld [vmem:[#allocation6 + $0x180] sm:$0xff]
    %v516 = vld [vmem:[#allocation6 + $0x188] sm:$0xff]
    %v517 = vld [vmem:[#allocation6 + $0x190] sm:$0xff]
    %v518 = vld [vmem:[#allocation6 + $0x198] sm:$0xff]
    %v519 = vld [vmem:[#allocation6 + $0x1a0] sm:$0xff]
    %v520 = vld [vmem:[#allocation6 + $0x1a8] sm:$0xff]
    %v521 = vld [vmem:[#allocation6 + $0x1b0] sm:$0xff]
    %v522 = vld [vmem:[#allocation6 + $0x1b8] sm:$0xff]
    %v523 = vld [vmem:[#allocation6 + $0x1c0] sm:$0xff]
    %v524 = vld [vmem:[#allocation6 + $0x1c8] sm:$0xff]
    %v525 = vld [vmem:[#allocation6 + $0x1d0] sm:$0xff]
    %v526 = vld [vmem:[#allocation6 + $0x1d8] sm:$0xff]
    %v527 = vld [vmem:[#allocation6 + $0x1e0] sm:$0xff]
    %v528 = vld [vmem:[#allocation6 + $0x1e8] sm:$0xff]
    %v529 = vld [vmem:[#allocation6 + $0x1f0] sm:$0xff]
    %v530 = vld [vmem:[#allocation6 + $0x1f8] sm:$0xff]
    %v531 = vld [vmem:[#allocation7 + $0x4] sm:$0x1]
    %v533 = vperm.slane %v531, 0
    %535 = vmatpush.msra.mxu0 %v482
    %536 = vmatpush.msra.mxu0 %v481
    %537 = vmatpush.msra.mxu0 %v480
    %538 = vmatpush.msra.mxu0 %v479
    %539 = vmatpush.msra.mxu0 %v478
    %540 = vmatpush.msra.mxu0 %v477
    %541 = vmatpush.msra.mxu0 %v476
    %542 = vmatpush.msra.mxu0 %v475
    %543 = vmatpush.msra.mxu0 %v474
    %544 = vmatpush.msra.mxu0 %v473
    %545 = vmatpush.msra.mxu0 %v472
    %546 = vmatpush.msra.mxu0 %v471
    %547 = vmatpush.msra.mxu0 %v470
    %548 = vmatpush.msra.mxu0 %v469
    %549 = vmatpush.msra.mxu0 %v468
    %550 = vmatpush.msra.mxu0 %v467
    %551 = vmatmul.f32.gmra.mxu0 %v463
    %v552 = vpop.f32.mrf.mxu0
    %v553 = vadd.f32 %v533, %v552
    %554 = vdwg.mxu0
    %555 = vmatpush.msra.mxu0 %v498
    %556 = vmatpush.msra.mxu0 %v497
    %557 = vmatpush.msra.mxu0 %v496
    %558 = vmatpush.msra.mxu0 %v495
    %559 = vmatpush.msra.mxu0 %v494
    %560 = vmatpush.msra.mxu0 %v493
    %561 = vmatpush.msra.mxu0 %v492
    %562 = vmatpush.msra.mxu0 %v491
    %563 = vmatpush.msra.mxu0 %v490
    %564 = vmatpush.msra.mxu0 %v489
    %565 = vmatpush.msra.mxu0 %v488
    %566 = vmatpush.msra.mxu0 %v487
    %567 = vmatpush.msra.mxu0 %v486
    %568 = vmatpush.msra.mxu0 %v485
    %569 = vmatpush.msra.mxu0 %v484
    %570 = vmatpush.msra.mxu0 %v483
    %571 = vmatmul.f32.gmra.mxu0 %v464
    %v572 = vpop.f32.mrf.mxu0
    %v573 = vadd.f32 %v553, %v572
    %574 = vdwg.mxu0
    %575 = vmatpush.msra.mxu0 %v514
    %576 = vmatpush.msra.mxu0 %v513
    %577 = vmatpush.msra.mxu0 %v512
    %578 = vmatpush.msra.mxu0 %v511
    %579 = vmatpush.msra.mxu0 %v510
    %580 = vmatpush.msra.mxu0 %v509
    %581 = vmatpush.msra.mxu0 %v508
    %582 = vmatpush.msra.mxu0 %v507
    %583 = vmatpush.msra.mxu0 %v506
    %584 = vmatpush.msra.mxu0 %v505
    %585 = vmatpush.msra.mxu0 %v504
    %586 = vmatpush.msra.mxu0 %v503
    %587 = vmatpush.msra.mxu0 %v502
    %588 = vmatpush.msra.mxu0 %v501
    %589 = vmatpush.msra.mxu0 %v500
    %590 = vmatpush.msra.mxu0 %v499
    %591 = vmatmul.f32.gmra.mxu0 %v465
    %v592 = vpop.f32.mrf.mxu0
    %v593 = vadd.f32 %v573, %v592
    %594 = vdwg.mxu0
    %595 = vmatpush.msra.mxu0 %v530
    %596 = vmatpush.msra.mxu0 %v529
    %597 = vmatpush.msra.mxu0 %v528
    %598 = vmatpush.msra.mxu0 %v527
    %599 = vmatpush.msra.mxu0 %v526
    %600 = vmatpush.msra.mxu0 %v525
    %601 = vmatpush.msra.mxu0 %v524
    %602 = vmatpush.msra.mxu0 %v523
    %603 = vmatpush.msra.mxu0 %v522
    %604 = vmatpush.msra.mxu0 %v521
    %605 = vmatpush.msra.mxu0 %v520
    %606 = vmatpush.msra.mxu0 %v519
    %607 = vmatpush.msra.mxu0 %v518
    %608 = vmatpush.msra.mxu0 %v517
    %609 = vmatpush.msra.mxu0 %v516
    %610 = vmatpush.msra.mxu0 %v515
    %611 = vmatmul.f32.gmra.mxu0 %v466
    %v612 = vpop.f32.mrf.mxu0
    %v613 = vadd.f32 %v593, %v612
    %614 = vdwg.mxu0
    %v615 = vmax.f32 %v613, 0.0
    %616 = vmatpush.msra.mxu0 0.0
    %617 = vmatpush.msra.mxu0 0.0
    %618 = vmatpush.msra.mxu0 0.0
    %619 = vmatpush.msra.mxu0 0.0
    %620 = vmatpush.msra.mxu0 0.0
    %621 = vmatpush.msra.mxu0 0.0
    %622 = vmatpush.msra.mxu0 0.0
    %623 = vmatpush.msra.mxu0 0.0
    %624 = vmatpush.msra.mxu0 0.0
    %625 = vmatpush.msra.mxu0 0.0
    %626 = vmatpush.msra.mxu0 0.0
    %627 = vmatpush.msra.mxu0 0.0
    %628 = vmatpush.msra.mxu0 0.0
    %629 = vmatpush.msra.mxu0 0.0
    %630 = vmatpush.msra.mxu0 0.0
    %631 = vmatpush.msra.mxu0 %v615
    %632 = vmatmul.f32.gmra.mxu0 %v178
    %v633 = vpop.f32.mrf.mxu0
    %v634 = vadd.f32 0.0, %v633
    %635 = vdwg.mxu0
    %v636 = vmul.f32 %v615, %v615
    %637 = vmatpush.msra.mxu0 0.0
    %638 = vmatpush.msra.mxu0 0.0
    %639 = vmatpush.msra.mxu0 0.0
    %640 = vmatpush.msra.mxu0 0.0
    %641 = vmatpush.msra.mxu0 0.0
    %642 = vmatpush.msra.mxu0 0.0
    %643 = vmatpush.msra.mxu0 0.0
    %644 = vmatpush.msra.mxu0 0.0
    %645 = vmatpush.msra.mxu0 0.0
    %646 = vmatpush.msra.mxu0 0.0
    %647 = vmatpush.msra.mxu0 0.0
    %648 = vmatpush.msra.mxu0 0.0
    %649 = vmatpush.msra.mxu0 0.0
    %650 = vmatpush.msra.mxu0 0.0
    %651 = vmatpush.msra.mxu0 0.0
    %652 = vmatpush.msra.mxu0 %v636
    %653 = vmatmul.f32.gmra.mxu0 %v178
    %v654 = vpop.f32.mrf.mxu0
    %v655 = vadd.f32 0.0, %v654
    %656 = vdwg.mxu0
    %v657 = vmul.f32 %v634, 0.125
    %v658 = vmul.f32 %v655, 0.125
    %v659 = vmul.f32 %v657, %v657
    %v660 = vsub.f32 %v658, %v659
    %v661 = vmax.f32 %v660, 0.0
    %v662 = vld [vmem:[#allocation7 + $0xe] sm:$0x1]
    %v663 = vadd.f32 %v661, 1e-05
    %v664 = vrsqrt.pop %v663
    %v665 = vmul.f32 %v664, %v663
    %v666 = vmul.f32 %v665, %v664
    %v667 = vmul.f32 0.5, %v666
    %v668 = vsub.f32 1.5, %v667
    %v669 = vmul.f32 %v664, %v668
    %vm670 = vweird.f32 %v663
    %vm671 = vweird.f32 %v664
    %vm672 = vmor %vm670, %vm671
    %v673 = vsel %vm672, %v664, %v669
    %v674 = vmul.f32 %v662, %v673
    %v675 = vld [vmem:[#allocation7 + $0x15] sm:$0x1]
    %v676 = vmul.f32 %v657, %v674
    %v677 = vsub.f32 %v675, %v676
    %v679 = vperm.slane %v674, 0
    %v681 = vmul.f32 %v615, %v679
    %v683 = vperm.slane %v677, 0
    %v685 = vadd.f32 %v681, %v683
    %v686 = vld [vmem:[#allocation6 + $0x200] sm:$0xff]
    %v687 = vld [vmem:[#allocation6 + $0x208] sm:$0xff]
    %v688 = vld [vmem:[#allocation6 + $0x210] sm:$0xff]
    %v689 = vld [vmem:[#allocation6 + $0x218] sm:$0xff]
    %v690 = vld [vmem:[#allocation6 + $0x220] sm:$0xff]
    %v691 = vld [vmem:[#allocation6 + $0x228] sm:$0xff]
    %v692 = vld [vmem:[#allocation6 + $0x230] sm:$0xff]
    %v693 = vld [vmem:[#allocation6 + $0x238] sm:$0xff]
    %v694 = vld [vmem:[#allocation6 + $0x240] sm:$0xff]
    %v695 = vld [vmem:[#allocation6 + $0x248] sm:$0xff]
    %v696 = vld [vmem:[#allocation6 + $0x250] sm:$0xff]
    %v697 = vld [vmem:[#allocation6 + $0x258] sm:$0xff]
    %v698 = vld [vmem:[#allocation6 + $0x260] sm:$0xff]
    %v699 = vld [vmem:[#allocation6 + $0x268] sm:$0xff]
    %v700 = vld [vmem:[#allocation6 + $0x270] sm:$0xff]
    %v701 = vld [vmem:[#allocation6 + $0x278] sm:$0xff]
    %v702 = vld [vmem:[#allocation7 + $0x5] sm:$0x1]
    %v704 = vperm.slane %v702, 0
    %706 = vmatpush.msra.mxu0 %v701
    %707 = vmatpush.msra.mxu0 %v700
    %708 = vmatpush.msra.mxu0 %v699
    %709 = vmatpush.msra.mxu0 %v698
    %710 = vmatpush.msra.mxu0 %v697
    %711 = vmatpush.msra.mxu0 %v696
    %712 = vmatpush.msra.mxu0 %v695
    %713 = vmatpush.msra.mxu0 %v694
    %714 = vmatpush.msra.mxu0 %v693
    %715 = vmatpush.msra.mxu0 %v692
    %716 = vmatpush.msra.mxu0 %v691
    %717 = vmatpush.msra.mxu0 %v690
    %718 = vmatpush.msra.mxu0 %v689
    %719 = vmatpush.msra.mxu0 %v688
    %720 = vmatpush.msra.mxu0 %v687
    %721 = vmatpush.msra.mxu0 %v686
    %722 = vmatmul.f32.gmra.mxu0 %v685
    %v723 = vpop.f32.mrf.mxu0
    %v724 = vadd.f32 %v704, %v723
    %725 = vdwg.mxu0
    %v726 = vmax.f32 %v724, 0.0
    %727 = vmatpush.msra.mxu0 0.0
    %728 = vmatpush.msra.mxu0 0.0
    %729 = vmatpush.msra.mxu0 0.0
    %730 = vmatpush.msra.mxu0 0.0
    %731 = vmatpush.msra.mxu0 0.0
    %732 = vmatpush.msra.mxu0 0.0
    %733 = vmatpush.msra.mxu0 0.0
    %734 = vmatpush.msra.mxu0 0.0
    %735 = vmatpush.msra.mxu0 0.0
    %736 = vmatpush.msra.mxu0 0.0
    %737 = vmatpush.msra.mxu0 0.0
    %738 = vmatpush.msra.mxu0 0.0
    %739 = vmatpush.msra.mxu0 0.0
    %740 = vmatpush.msra.mxu0 0.0
    %741 = vmatpush.msra.mxu0 0.0
    %742 = vmatpush.msra.mxu0 %v726
    %743 = vmatmul.f32.gmra.mxu0 %v178
    %v744 = vpop.f32.mrf.mxu0
    %v745 = vadd.f32 0.0, %v744
    %746 = vdwg.mxu0
    %v747 = vmul.f32 %v726, %v726
    %748 = vmatpush.msra.mxu0 0.0
    %749 = vmatpush.msra.mxu0 0.0
    %750 = vmatpush.msra.mxu0 0.0
    %751 = vmatpush.msra.mxu0 0.0
    %752 = vmatpush.msra.mxu0 0.0
    %753 = vmatpush.msra.mxu0 0.0
    %754 = vmatpush.msra.mxu0 0.0
    %755 = vmatpush.msra.mxu0 0.0
    %756 = vmatpush.msra.mxu0 0.0
    %757 = vmatpush.msra.mxu0 0.0
    %758 = vmatpush.msra.mxu0 0.0
    %759 = vmatpush.msra.mxu0 0.0
    %760 = vmatpush.msra.mxu0 0.0
    %761 = vmatpush.msra.mxu0 0.0
    %762 = vmatpush.msra.mxu0 0.0
    %763 = vmatpush.msra.mxu0 %v747
    %764 = vmatmul.f32.gmra.mxu0 %v178
    %v765 = vpop.f32.mrf.mxu0
    %v766 = vadd.f32 0.0, %v765
    %767 = vdwg.mxu0
    %v768 = vmul.f32 %v745, 0.125
    %v769 = vmul.f32 %v766, 0.125
    %v770 = vmul.f32 %v768, %v768
    %v771 = vsub.f32 %v769, %v770
    %v772 = vmax.f32 %v771, 0.0
    %v773 = vld [vmem:[#allocation7 + $0xf] sm:$0x1]
    %v774 = vadd.f32 %v772, 1e-05
    %v775 = vrsqrt.pop %v774
    %v776 = vmul.f32 %v775, %v774
    %v777 = vmul.f32 %v776, %v775
    %v778 = vmul.f32 0.5, %v777
    %v779 = vsub.f32 1.5, %v778
    %v780 = vmul.f32 %v775, %v779
    %vm781 = vweird.f32 %v774
    %vm782 = vweird.f32 %v775
    %vm783 = vmor %vm781, %vm782
    %v784 = vsel %vm783, %v775, %v780
    %v785 = vmul.f32 %v773, %v784
    %v786 = vld [vmem:[#allocation7 + $0x16] sm:$0x1]
    %v787 = vmul.f32 %v768, %v785
    %v788 = vsub.f32 %v786, %v787
    %v790 = vperm.slane %v785, 0
    %v792 = vmul.f32 %v726, %v790
    %v794 = vperm.slane %v788, 0
    %v796 = vadd.f32 %v792, %v794
    %v797 = vld [vmem:[#allocation6 + $0x280] sm:$0xff]
    %v798 = vld [vmem:[#allocation6 + $0x288] sm:$0xff]
    %v799 = vld [vmem:[#allocation6 + $0x290] sm:$0xff]
    %v800 = vld [vmem:[#allocation6 + $0x298] sm:$0xff]
    %v801 = vld [vmem:[#allocation6 + $0x2a0] sm:$0xff]
    %v802 = vld [vmem:[#allocation6 + $0x2a8] sm:$0xff]
    %v803 = vld [vmem:[#allocation6 + $0x2b0] sm:$0xff]
    %v804 = vld [vmem:[#allocation6 + $0x2b8] sm:$0xff]
    %v805 = vld [vmem:[#allocation7 + $0x6] sm:$0x1]
    %v807 = vperm.slane %v805, 0
    %vm809 = vcmask 523264
    %v811 = vsel %vm809, %v796, 0
    %813 = vmatpush.msra.mxu0 0.0
    %814 = vmatpush.msra.mxu0 0.0
    %815 = vmatpush.msra.mxu0 0.0
    %816 = vmatpush.msra.mxu0 0.0
    %817 = vmatpush.msra.mxu0 0.0
    %818 = vmatpush.msra.mxu0 0.0
    %819 = vmatpush.msra.mxu0 0.0
    %820 = vmatpush.msra.mxu0 0.0
    %821 = vmatpush.msra.mxu0 %v804
    %822 = vmatpush.msra.mxu0 %v803
    %823 = vmatpush.msra.mxu0 %v802
    %824 = vmatpush.msra.mxu0 %v801
    %825 = vmatpush.msra.mxu0 %v800
    %826 = vmatpush.msra.mxu0 %v799
    %827 = vmatpush.msra.mxu0 %v798
    %828 = vmatpush.msra.mxu0 %v797
    %829 = vmatmul.f32.gmra.mxu0 %v811
    %v830 = vpop.f32.mrf.mxu0
    %v831 = vadd.f32 %v807, %v830
    %832 = vdwg.mxu0
    %v833 = vmax.f32 %v831, 0.0
    %834 = vmatpush.msra.mxu0 0.0
    %835 = vmatpush.msra.mxu0 0.0
    %836 = vmatpush.msra.mxu0 0.0
    %837 = vmatpush.msra.mxu0 0.0
    %838 = vmatpush.msra.mxu0 0.0
    %839 = vmatpush.msra.mxu0 0.0
    %840 = vmatpush.msra.mxu0 0.0
    %841 = vmatpush.msra.mxu0 0.0
    %842 = vmatpush.msra.mxu0 0.0
    %843 = vmatpush.msra.mxu0 0.0
    %844 = vmatpush.msra.mxu0 0.0
    %845 = vmatpush.msra.mxu0 0.0
    %846 = vmatpush.msra.mxu0 0.0
    %847 = vmatpush.msra.mxu0 0.0
    %848 = vmatpush.msra.mxu0 0.0
    %849 = vmatpush.msra.mxu0 %v833
    %850 = vmatmul.f32.gmra.mxu0 %v178
    %v851 = vpop.f32.mrf.mxu0
    %v852 = vadd.f32 0.0, %v851
    %853 = vdwg.mxu0
    %v854 = vmul.f32 %v833, %v833
    %855 = vmatpush.msra.mxu0 0.0
    %856 = vmatpush.msra.mxu0 0.0
    %857 = vmatpush.msra.mxu0 0.0
    %858 = vmatpush.msra.mxu0 0.0
    %859 = vmatpush.msra.mxu0 0.0
    %860 = vmatpush.msra.mxu0 0.0
    %861 = vmatpush.msra.mxu0 0.0
    %862 = vmatpush.msra.mxu0 0.0
    %863 = vmatpush.msra.mxu0 0.0
    %864 = vmatpush.msra.mxu0 0.0
    %865 = vmatpush.msra.mxu0 0.0
    %866 = vmatpush.msra.mxu0 0.0
    %867 = vmatpush.msra.mxu0 0.0
    %868 = vmatpush.msra.mxu0 0.0
    %869 = vmatpush.msra.mxu0 0.0
    %870 = vmatpush.msra.mxu0 %v854
    %871 = vmatmul.f32.gmra.mxu0 %v178
    %v872 = vpop.f32.mrf.mxu0
    %v873 = vadd.f32 0.0, %v872
    %874 = vdwg.mxu0
    %v875 = vmul.f32 %v852, 0.125
    %v876 = vmul.f32 %v873, 0.125
    %v877 = vmul.f32 %v875, %v875
    %v878 = vsub.f32 %v876, %v877
    %v879 = vmax.f32 %v878, 0.0
    %v880 = vld [vmem:[#allocation7 + $0x10] sm:$0x1]
    %v881 = vadd.f32 %v879, 1e-05
    %v882 = vrsqrt.pop %v881
    %v883 = vmul.f32 %v882, %v881
    %v884 = vmul.f32 %v883, %v882
    %v885 = vmul.f32 0.5, %v884
    %v886 = vsub.f32 1.5, %v885
    %v887 = vmul.f32 %v882, %v886
    %vm888 = vweird.f32 %v881
    %vm889 = vweird.f32 %v882
    %vm890 = vmor %vm888, %vm889
    %v891 = vsel %vm890, %v882, %v887
    %v892 = vmul.f32 %v880, %v891
    %v893 = vld [vmem:[#allocation7 + $0x17] sm:$0x1]
    %v894 = vmul.f32 %v875, %v892
    %v895 = vsub.f32 %v893, %v894
    %v897 = vperm.slane %v892, 0
    %v899 = vmul.f32 %v833, %v897
    %v901 = vperm.slane %v895, 0
    %v903 = vadd.f32 %v899, %v901
    %v904 = vld [vmem:[#allocation6 + $0x2c0] sm:$0xff]
    %v905 = vld [vmem:[#allocation6 + $0x2c8] sm:$0xff]
    %v906 = vld [vmem:[#allocation6 + $0x2d0] sm:$0xff]
    %v907 = vld [vmem:[#allocation6 + $0x2d8] sm:$0xff]
    %v908 = vld [vmem:[#allocation7 + $0x7] sm:$0x1]
    %v910 = vperm.slane %v908, 0
    %vm912 = vcmask 261120
    %v914 = vsel %vm912, %v903, 0
    %916 = vmatpush.msra.mxu0 0.0
    %917 = vmatpush.msra.mxu0 0.0
    %918 = vmatpush.msra.mxu0 0.0
    %919 = vmatpush.msra.mxu0 0.0
    %920 = vmatpush.msra.mxu0 0.0
    %921 = vmatpush.msra.mxu0 0.0
    %922 = vmatpush.msra.mxu0 0.0
    %923 = vmatpush.msra.mxu0 0.0
    %924 = vmatpush.msra.mxu0 0.0
    %925 = vmatpush.msra.mxu0 0.0
    %926 = vmatpush.msra.mxu0 0.0
    %927 = vmatpush.msra.mxu0 0.0
    %928 = vmatpush.msra.mxu0 %v907
    %929 = vmatpush.msra.mxu0 %v906
    %930 = vmatpush.msra.mxu0 %v905
    %931 = vmatpush.msra.mxu0 %v904
    %932 = vmatmul.f32.gmra.mxu0 %v914
    %v933 = vpop.f32.mrf.mxu0
    %v934 = vadd.f32 %v910, %v933
    %935 = vdwg.mxu0
    %v936 = vmax.f32 %v934, 0.0
    %v937 = vld [vmem:[#allocation6 + $0x2e0] sm:$0xff]
    %v938 = vld [vmem:[#allocation6 + $0x2e8] sm:$0xff]
    %v939 = vld [vmem:[#allocation7 + $0x8] sm:$0x1]
    %v941 = vperm.slane %v939, 0
    %vm943 = vcmask 130048
    %v945 = vsel %vm943, %v936, 0
    %947 = vmatpush.msra.mxu0 0.0
    %948 = vmatpush.msra.mxu0 0.0
    %949 = vmatpush.msra.mxu0 0.0
    %950 = vmatpush.msra.mxu0 0.0
    %951 = vmatpush.msra.mxu0 0.0
    %952 = vmatpush.msra.mxu0 0.0
    %953 = vmatpush.msra.mxu0 0.0
    %954 = vmatpush.msra.mxu0 0.0
    %955 = vmatpush.msra.mxu0 0.0
    %956 = vmatpush.msra.mxu0 0.0
    %957 = vmatpush.msra.mxu0 0.0
    %958 = vmatpush.msra.mxu0 0.0
    %959 = vmatpush.msra.mxu0 0.0
    %960 = vmatpush.msra.mxu0 0.0
    %961 = vmatpush.msra.mxu0 %v938
    %962 = vmatpush.msra.mxu0 %v937
    %963 = vmatmul.f32.gmra.mxu0 %v945
    %v964 = vpop.f32.mrf.mxu0
    %v965 = vadd.f32 %v941, %v964
    %966 = vdwg.mxu0
    %v967 = vmax.f32 %v965, 0.0
    %v968 = vld [vmem:[#allocation6 + $0x2f0] sm:$0xff]
    %v969 = vld [vmem:[#allocation7 + $0x9] sm:$0x1]
    %v971 = vperm.slane %v969, 0
    %v974 = vsel %vm89, %v967, 0
    %976 = vmatpush.msra.mxu0 0.0
    %977 = vmatpush.msra.mxu0 0.0
    %978 = vmatpush.msra.mxu0 0.0
    %979 = vmatpush.msra.mxu0 0.0
    %980 = vmatpush.msra.mxu0 0.0
    %981 = vmatpush.msra.mxu0 0.0
    %982 = vmatpush.msra.mxu0 0.0
    %983 = vmatpush.msra.mxu0 0.0
    %984 = vmatpush.msra.mxu0 0.0
    %985 = vmatpush.msra.mxu0 0.0
    %986 = vmatpush.msra.mxu0 0.0
    %987 = vmatpush.msra.mxu0 0.0
    %988 = vmatpush.msra.mxu0 0.0
    %989 = vmatpush.msra.mxu0 0.0
    %990 = vmatpush.msra.mxu0 0.0
    %991 = vmatpush.msra.mxu0 %v968
    %992 = vmatmul.f32.gmra.mxu0 %v974
    %v993 = vpop.f32.mrf.mxu0
    %v994 = vadd.f32 %v971, %v993
    %995 = vdwg.mxu0
    %v996 = vtanh.pop %v994
    %vm997 = vcmask 31744
    %998 = vst.msk [vmem:[%s4] sm:$0xff] %vm997, %v996
    // Predicated region
    $region34: #{tpu_custom_call.1} parent=1 // pred_check
      _
    $region35: #{tpu_custom_call.1} parent=1 // pred_check_branch
      %1000 = sbr.rel (0) target = $region37
    $region36: #{tpu_custom_call.1} parent=1 // pred_region
      _
    $region37: #{tpu_custom_call.1} parent=1 // pred_fallthru
      _
    // Predicated region
    $region38: #{tpu_custom_call.1} parent=1 // pred_check
      _
    $region39: #{tpu_custom_call.1} parent=1 // pred_check_branch
      %1002 = sbr.rel (0) target = $region41
    $region40: #{tpu_custom_call.1} parent=1 // pred_region
      _
    $region41: #{tpu_custom_call.1} parent=1 // pred_fallthru
      _
    %1003 = vsyncpa [#allocation3], 1
    %1004 = vsyncpa [#allocation5], 1
    %1005 = vsyncpa [#allocation8], 1

</llo_original>
